<compile_context>
chip_gen: v6e
topology: v6e:2x2x1
jax: 0.10.0
libtpu: 0.0.40
codegen_flags: <defaults>
</compile_context>

<pallas_src>
import functools

import jax
import jax.numpy as jnp
import numpy as np
from jax.experimental import pallas as pl
from jax.experimental.pallas import tpu as pltpu

# Same intervals as the PyTorch module.
WEIGHT_INTERVALS = [
    (0.0, 0.1, 1.0), (0.1, 0.2, 2.0), (0.2, 0.3, 3.0), (0.3, 0.4, 4.0),
    (0.4, 0.5, 5.0), (0.5, 0.6, 6.0), (0.6, 0.7, 7.0), (0.7, 0.8, 8.0),
    (0.8, 0.9, 9.0), (0.9, 1.0, 10.0),
]


def _weighted_mse_kernel(inp_ref, tgt_ref, out_ref, *, total_rows, inv_n):
    i = pl.program_id(0)
    nb = pl.num_programs(0)

    # Init accumulator (resident (1,1) output block) on the first tile.
    @pl.when(i == 0)
    def _():
        out_ref[...] = jnp.zeros_like(out_ref)

    # In-kernel upcast: DMA moved native-dtype bytes, cast rides the VPU.
    inp = inp_ref[...].astype(jnp.float32)   # (TB, C)
    tgt = tgt_ref[...].astype(jnp.float32)   # (TB, C)

    # rr_target = targets[:, 0], kept as (TB, 1) for broadcasting.
    rr = tgt[:, 0:1]

    # Exact PyTorch interval semantics (disjoint; outside [0, 1) -> weight 0).
    # Computed once per (TB, 1) column, broadcast over features below.
    w = jnp.zeros_like(rr)
    for lower, upper, weight in WEIGHT_INTERVALS:
        mask = (rr >= jnp.float32(lower)) & (rr < jnp.float32(upper))
        w = jnp.where(mask, jnp.float32(weight), w)

    diff = inp - tgt
    weighted = diff * diff * w                # (TB, C) * (TB, 1)

    # Mask rows of the ragged last tile (undefined padded data -> 0).
    tb = inp.shape[0]
    row_ids = jax.lax.broadcasted_iota(jnp.int32, (tb, 1), 0) + i * tb
    weighted = jnp.where(row_ids < total_rows, weighted, jnp.float32(0.0))

    # Accumulate the partial sum into the resident output block.
    out_ref[...] += jnp.sum(weighted, keepdims=True)

    # Finalize: turn the global sum into the mean on the last tile.
    @pl.when(i == nb - 1)
    def _():
        out_ref[...] *= jnp.float32(inv_n)


def weighted_mse_loss(inputs, targets, *, block_rows=None,
                      target_tile_bytes=2 * 1024 * 1024):
    """Pallas-backed WeightedMSELoss.forward. Returns a scalar float32.

    inputs/targets: (B, C) arrays (f32 or bf16). block_rows optionally forces
    the batch tile size (must be a multiple of 8, or equal to B).
    """
    assert inputs.shape == targets.shape and inputs.ndim == 2
    B, C = inputs.shape
    itemsize = jnp.dtype(inputs.dtype).itemsize

    # Pick a batch tile: biggest tile whose two input buffers (x2 for double
    # buffering) stay comfortably inside scoped VMEM on v5e/v6e/v7x.
    if block_rows is not None:
        tb = int(block_rows)
    else:
        max_rows = max(8, (target_tile_bytes // max(1, C * itemsize)) // 8 * 8)
        if B % 8 == 0:
            tb = min(B, max_rows)
        elif B <= max_rows:
            tb = B          # single block == full dim (always a legal block)
        else:
            tb = max_rows   # multiple of 8; ragged last tile handled by mask

    num_blocks = pl.cdiv(B, tb)

    kernel = functools.partial(
        _weighted_mse_kernel, total_rows=B, inv_n=1.0 / float(B * C))

    out = pl.pallas_call(
        kernel,
        out_shape=jax.ShapeDtypeStruct((1, 1), jnp.float32),
        grid_spec=pl.GridSpec(
            grid=(num_blocks,),
            in_specs=[
                pl.BlockSpec((tb, C), lambda i: (i, 0)),
                pl.BlockSpec((tb, C), lambda i: (i, 0)),
            ],
            out_specs=pl.BlockSpec((1, 1), lambda i: (0, 0)),
        ),
        compiler_params=pltpu.CompilerParams(
            dimension_semantics=("arbitrary",)),
    )(inputs, targets)
    return out[0, 0]


def _reference(inputs, targets):
    """Pure-JAX reference mirroring the PyTorch semantics (for validation)."""
    inputs = inputs.astype(jnp.float32)
    targets = targets.astype(jnp.float32)
    rr = targets[:, 0]
    w_row = jnp.zeros_like(rr)
    for lower, upper, weight in WEIGHT_INTERVALS:
        mask = (rr >= jnp.float32(lower)) & (rr < jnp.float32(upper))
        w_row = jnp.where(mask, jnp.float32(weight), w_row)
    weights = jnp.broadcast_to(w_row[:, None], targets.shape)
    loss = (inputs - targets) ** 2
    return jnp.mean(loss * weights)


if __name__ == "__main__":
    key = jax.random.PRNGKey(0)
    k1, k2 = jax.random.split(key)

    # Small (N, features) shapes implied by the module; B=40 with block_rows=16
    # exercises init / accumulate / finalize phases and the ragged-tile mask
    # (grid = 3 tiles, last tile half empty).
    B, C = 40, 8
    targets = jax.random.uniform(k1, (B, C), dtype=jnp.float32)  # rr in [0, 1)
    inputs = jax.random.uniform(k2, (B, C), dtype=jnp.float32)

    out = weighted_mse_loss(inputs, targets, block_rows=16)
    out = jax.block_until_ready(out)

    ref = jax.block_until_ready(_reference(inputs, targets))
    np.testing.assert_allclose(np.asarray(out), np.asarray(ref),
                               rtol=1e-6, atol=1e-6)
    print("KERNEL_OK")
</pallas_src>

<mosaic_0001>
module attributes {stable_mosaic.version = 11 : i64} {
  func.func @_weighted_mse_kernel(%arg0: i32, %arg1: memref<16x8xf32, #tpu.memory_space<vmem>>, %arg2: memref<16x8xf32, #tpu.memory_space<vmem>>, %arg3: memref<1x1xf32, #tpu.memory_space<vmem>>) attributes {dimension_semantics = [#tpu.dimension_semantics<arbitrary>], iteration_bounds = array<i64: 3>, scalar_prefetch = 0 : i64, scratch_operands = 0 : i64, tpu.core_type = #tpu.core_type<tc>, window_params = [{transform_indices = @transform_0, window_bounds = array<i64: 16, 8>}, {transform_indices = @transform_1, window_bounds = array<i64: 16, 8>}, {pipeline_mode = #tpu.pipeline_mode<synchronous>, transform_indices = @transform_2, window_bounds = array<i64: 1, 1>}]} {
    %c0_i32 = arith.constant 0 : i32
    %0 = arith.cmpi eq, %arg0, %c0_i32 : i32
    %1 = arith.extui %0 : i1 to i32
    %c0_i32_0 = arith.constant 0 : i32
    %2 = arith.cmpi ne, %1, %c0_i32_0 : i32
    scf.if %2 {
      %cst_41 = arith.constant 0.000000e+00 : f32
      %102 = vector.broadcast %cst_41 : f32 to vector<1x1xf32>
      %c0_42 = arith.constant 0 : index
      %c0_43 = arith.constant 0 : index
      %103 = vector.load %arg3[%c0_42, %c0_43] : memref<1x1xf32, #tpu.memory_space<vmem>>, vector<1x1xf32>
      tpu.vector_store %arg3[%c0_42, %c0_43], %102 {strides = array<i32>} : memref<1x1xf32, #tpu.memory_space<vmem>>, vector<1x1xf32>,
    } else {
    }
    %c0 = arith.constant 0 : index
    %c0_1 = arith.constant 0 : index
    %3 = vector.load %arg1[%c0, %c0_1] : memref<16x8xf32, #tpu.memory_space<vmem>>, vector<16x8xf32>
    %c0_2 = arith.constant 0 : index
    %c0_3 = arith.constant 0 : index
    %4 = vector.load %arg2[%c0_2, %c0_3] : memref<16x8xf32, #tpu.memory_space<vmem>>, vector<16x8xf32>
    %5 = vector.extract_strided_slice %4 {offsets = [0, 0], sizes = [16, 1], strides = [1, 1]} : vector<16x8xf32> to vector<16x1xf32>
    %cst = arith.constant 0.000000e+00 : f32
    %6 = vector.broadcast %cst : f32 to vector<16x1xf32>
    %cst_4 = arith.constant 0.000000e+00 : f32
    %7 = vector.broadcast %cst_4 : f32 to vector<16x1xf32>
    %8 = arith.cmpf oge, %5, %7 : vector<16x1xf32>
    %cst_5 = arith.constant 1.000000e-01 : f32
    %9 = vector.broadcast %cst_5 : f32 to vector<16x1xf32>
    %10 = arith.cmpf olt, %5, %9 : vector<16x1xf32>
    %11 = arith.andi %8, %10 : vector<16x1xi1>
    %cst_6 = arith.constant 1.000000e+00 : f32
    %12 = vector.broadcast %cst_6 : f32 to vector<16x1xf32>
    %13 = arith.select %11, %12, %6 : vector<16x1xi1>, vector<16x1xf32>
    %cst_7 = arith.constant 1.000000e-01 : f32
    %14 = vector.broadcast %cst_7 : f32 to vector<16x1xf32>
    %15 = arith.cmpf oge, %5, %14 : vector<16x1xf32>
    %cst_8 = arith.constant 2.000000e-01 : f32
    %16 = vector.broadcast %cst_8 : f32 to vector<16x1xf32>
    %17 = arith.cmpf olt, %5, %16 : vector<16x1xf32>
    %18 = arith.andi %15, %17 : vector<16x1xi1>
    %cst_9 = arith.constant 2.000000e+00 : f32
    %19 = vector.broadcast %cst_9 : f32 to vector<16x1xf32>
    %20 = arith.select %18, %19, %13 : vector<16x1xi1>, vector<16x1xf32>
    %cst_10 = arith.constant 2.000000e-01 : f32
    %21 = vector.broadcast %cst_10 : f32 to vector<16x1xf32>
    %22 = arith.cmpf oge, %5, %21 : vector<16x1xf32>
    %cst_11 = arith.constant 3.000000e-01 : f32
    %23 = vector.broadcast %cst_11 : f32 to vector<16x1xf32>
    %24 = arith.cmpf olt, %5, %23 : vector<16x1xf32>
    %25 = arith.andi %22, %24 : vector<16x1xi1>
    %cst_12 = arith.constant 3.000000e+00 : f32
    %26 = vector.broadcast %cst_12 : f32 to vector<16x1xf32>
    %27 = arith.select %25, %26, %20 : vector<16x1xi1>, vector<16x1xf32>
    %cst_13 = arith.constant 3.000000e-01 : f32
    %28 = vector.broadcast %cst_13 : f32 to vector<16x1xf32>
    %29 = arith.cmpf oge, %5, %28 : vector<16x1xf32>
    %cst_14 = arith.constant 4.000000e-01 : f32
    %30 = vector.broadcast %cst_14 : f32 to vector<16x1xf32>
    %31 = arith.cmpf olt, %5, %30 : vector<16x1xf32>
    %32 = arith.andi %29, %31 : vector<16x1xi1>
    %cst_15 = arith.constant 4.000000e+00 : f32
    %33 = vector.broadcast %cst_15 : f32 to vector<16x1xf32>
    %34 = arith.select %32, %33, %27 : vector<16x1xi1>, vector<16x1xf32>
    %cst_16 = arith.constant 4.000000e-01 : f32
    %35 = vector.broadcast %cst_16 : f32 to vector<16x1xf32>
    %36 = arith.cmpf oge, %5, %35 : vector<16x1xf32>
    %cst_17 = arith.constant 5.000000e-01 : f32
    %37 = vector.broadcast %cst_17 : f32 to vector<16x1xf32>
    %38 = arith.cmpf olt, %5, %37 : vector<16x1xf32>
    %39 = arith.andi %36, %38 : vector<16x1xi1>
    %cst_18 = arith.constant 5.000000e+00 : f32
    %40 = vector.broadcast %cst_18 : f32 to vector<16x1xf32>
    %41 = arith.select %39, %40, %34 : vector<16x1xi1>, vector<16x1xf32>
    %cst_19 = arith.constant 5.000000e-01 : f32
    %42 = vector.broadcast %cst_19 : f32 to vector<16x1xf32>
    %43 = arith.cmpf oge, %5, %42 : vector<16x1xf32>
    %cst_20 = arith.constant 6.000000e-01 : f32
    %44 = vector.broadcast %cst_20 : f32 to vector<16x1xf32>
    %45 = arith.cmpf olt, %5, %44 : vector<16x1xf32>
    %46 = arith.andi %43, %45 : vector<16x1xi1>
    %cst_21 = arith.constant 6.000000e+00 : f32
    %47 = vector.broadcast %cst_21 : f32 to vector<16x1xf32>
    %48 = arith.select %46, %47, %41 : vector<16x1xi1>, vector<16x1xf32>
    %cst_22 = arith.constant 6.000000e-01 : f32
    %49 = vector.broadcast %cst_22 : f32 to vector<16x1xf32>
    %50 = arith.cmpf oge, %5, %49 : vector<16x1xf32>
    %cst_23 = arith.constant 0.699999988 : f32
    %51 = vector.broadcast %cst_23 : f32 to vector<16x1xf32>
    %52 = arith.cmpf olt, %5, %51 : vector<16x1xf32>
    %53 = arith.andi %50, %52 : vector<16x1xi1>
    %cst_24 = arith.constant 7.000000e+00 : f32
    %54 = vector.broadcast %cst_24 : f32 to vector<16x1xf32>
    %55 = arith.select %53, %54, %48 : vector<16x1xi1>, vector<16x1xf32>
    %cst_25 = arith.constant 0.699999988 : f32
    %56 = vector.broadcast %cst_25 : f32 to vector<16x1xf32>
    %57 = arith.cmpf oge, %5, %56 : vector<16x1xf32>
    %cst_26 = arith.constant 8.000000e-01 : f32
    %58 = vector.broadcast %cst_26 : f32 to vector<16x1xf32>
    %59 = arith.cmpf olt, %5, %58 : vector<16x1xf32>
    %60 = arith.andi %57, %59 : vector<16x1xi1>
    %cst_27 = arith.constant 8.000000e+00 : f32
    %61 = vector.broadcast %cst_27 : f32 to vector<16x1xf32>
    %62 = arith.select %60, %61, %55 : vector<16x1xi1>, vector<16x1xf32>
    %cst_28 = arith.constant 8.000000e-01 : f32
    %63 = vector.broadcast %cst_28 : f32 to vector<16x1xf32>
    %64 = arith.cmpf oge, %5, %63 : vector<16x1xf32>
    %cst_29 = arith.constant 0.899999976 : f32
    %65 = vector.broadcast %cst_29 : f32 to vector<16x1xf32>
    %66 = arith.cmpf olt, %5, %65 : vector<16x1xf32>
    %67 = arith.andi %64, %66 : vector<16x1xi1>
    %cst_30 = arith.constant 9.000000e+00 : f32
    %68 = vector.broadcast %cst_30 : f32 to vector<16x1xf32>
    %69 = arith.select %67, %68, %62 : vector<16x1xi1>, vector<16x1xf32>
    %cst_31 = arith.constant 0.899999976 : f32
    %70 = vector.broadcast %cst_31 : f32 to vector<16x1xf32>
    %71 = arith.cmpf oge, %5, %70 : vector<16x1xf32>
    %cst_32 = arith.constant 1.000000e+00 : f32
    %72 = vector.broadcast %cst_32 : f32 to vector<16x1xf32>
    %73 = arith.cmpf olt, %5, %72 : vector<16x1xf32>
    %74 = arith.andi %71, %73 : vector<16x1xi1>
    %cst_33 = arith.constant 1.000000e+01 : f32
    %75 = vector.broadcast %cst_33 : f32 to vector<16x1xf32>
    %76 = arith.select %74, %75, %69 : vector<16x1xi1>, vector<16x1xf32>
    %77 = arith.subf %3, %4 : vector<16x8xf32>
    %78 = arith.mulf %77, %77 : vector<16x8xf32>
    %79 = vector.broadcast %76 : vector<16x1xf32> to vector<16x8xf32>
    %80 = arith.mulf %78, %79 : vector<16x8xf32>
    %81 = tpu.iota {dimensions = array<i32: 0>} : vector<16x1xi32>
    %c16_i32 = arith.constant 16 : i32
    %82 = arith.muli %arg0, %c16_i32 : i32
    %83 = vector.broadcast %82 : i32 to vector<16x1xi32>
    %84 = arith.addi %81, %83 : vector<16x1xi32>
    %c40_i32 = arith.constant 40 : i32
    %85 = vector.broadcast %c40_i32 : i32 to vector<16x1xi32>
    %86 = arith.cmpi slt, %84, %85 : vector<16x1xi32>
    %cst_34 = arith.constant 0.000000e+00 : f32
    %87 = vector.shape_cast %86 : vector<16x1xi1> to vector<16x1xi1>
    %88 = vector.broadcast %87 : vector<16x1xi1> to vector<16x8xi1>
    %89 = vector.broadcast %cst_34 : f32 to vector<16x8xf32>
    %90 = arith.select %88, %80, %89 : vector<16x8xi1>, vector<16x8xf32>
    %c0_35 = arith.constant 0 : index
    %c0_36 = arith.constant 0 : index
    %91 = vector.load %arg3[%c0_35, %c0_36] : memref<1x1xf32, #tpu.memory_space<vmem>>, vector<1x1xf32>
    %92 = vector.shape_cast %90 : vector<16x8xf32> to vector<1x16x8xf32>
    %cst_37 = arith.constant dense<0.000000e+00> : vector<1xf32>
    %93 = vector.multi_reduction <add>, %92, %cst_37 [1, 2] : vector<1x16x8xf32> to vector<1xf32>
    %94 = vector.shape_cast %93 : vector<1xf32> to vector<1x1x1xf32>
    %95 = vector.extract %94[0, 0, 0] : f32 from vector<1x1x1xf32>
    %96 = vector.broadcast %95 : f32 to vector<1x1xf32>
    %97 = arith.addf %91, %96 : vector<1x1xf32>
    %c0_38 = arith.constant 0 : index
    %c0_39 = arith.constant 0 : index
    %98 = vector.load %arg3[%c0_38, %c0_39] : memref<1x1xf32, #tpu.memory_space<vmem>>, vector<1x1xf32>
    tpu.vector_store %arg3[%c0_38, %c0_39], %97 {strides = array<i32>} : memref<1x1xf32, #tpu.memory_space<vmem>>, vector<1x1xf32>,
    %c2_i32 = arith.constant 2 : i32
    %99 = arith.cmpi eq, %arg0, %c2_i32 : i32
    %100 = arith.extui %99 : i1 to i32
    %c0_i32_40 = arith.constant 0 : i32
    %101 = arith.cmpi ne, %100, %c0_i32_40 : i32
    scf.if %101 {
      %c0_41 = arith.constant 0 : index
      %c0_42 = arith.constant 0 : index
      %102 = vector.load %arg3[%c0_41, %c0_42] : memref<1x1xf32, #tpu.memory_space<vmem>>, vector<1x1xf32>
      %cst_43 = arith.constant 3.125000e-03 : f32
      %103 = vector.broadcast %cst_43 : f32 to vector<1x1xf32>
      %104 = arith.mulf %102, %103 : vector<1x1xf32>
      %c0_44 = arith.constant 0 : index
      %c0_45 = arith.constant 0 : index
      %105 = vector.load %arg3[%c0_44, %c0_45] : memref<1x1xf32, #tpu.memory_space<vmem>>, vector<1x1xf32>
      tpu.vector_store %arg3[%c0_44, %c0_45], %104 {strides = array<i32>} : memref<1x1xf32, #tpu.memory_space<vmem>>, vector<1x1xf32>,
    } else {
    }
    return
  }
  func.func @transform_0(%arg0: i32) -> (i32, i32) {
    %c0_i32 = arith.constant 0 : i32
    %c0_i32_0 = arith.constant 0 : i32
    return %arg0, %c0_i32 : i32, i32
  }
  func.func @transform_1(%arg0: i32) -> (i32, i32) {
    %c0_i32 = arith.constant 0 : i32
    %c0_i32_0 = arith.constant 0 : i32
    return %arg0, %c0_i32 : i32, i32
  }
  func.func @transform_2(%arg0: i32) -> (i32, i32) {
    %c0_i32 = arith.constant 0 : i32
    %c0_i32_0 = arith.constant 0 : i32
    %c0_i32_1 = arith.constant 0 : i32
    return %c0_i32, %c0_i32_0 : i32, i32
  }
}

</mosaic_0001>

<llo_original>
// kernel: tpu_custom_call.1
$region0: #{tpu_custom_call.1}
  #allocation0 [shape = 'u32[]', space=smem, size = 0x4, offset = 0x4, fixed_abs, tag = 'smem constant byte address 0x4 - core index']
  #allocation1 [shape = 'u32[144,128]{1,0:T(1,128)}', space=vmem, size = 0x12000, scoped, tag = 'internal scratch']
  %s0 = inlined_call_operand.vmem [shape: f32[40,8], index: 0, kind: input, shape index: {}]
  %s1 = inlined_call_operand.vmem [shape: f32[40,8], index: 1, kind: input, shape index: {}]
  %s2 = inlined_call_operand.hbm [shape: f32[1,1], index: 2, kind: output, shape index: {}]
  %s3 = sld [smem:[#allocation0]]
  $region49: #{tpu_custom_call.1} parent=0
    _
  %s5 = ssub.s32 1, %s3
  %s6 = scalar_select 0, %s5, %s3
  $region1: #{tpu_custom_call.1} parent=0
    #allocation2 [shape = 'u8[512]{0}', space=vmem, size = 0x400, scoped, tag = 'output window, operand 0, single buffered']
    #allocation3 [shape = 's32[2]{0}', space=sflag, size = 0x8, scoped, tag = 'scoped memory for tpu_custom_call.1']
    %7 = vsyncpa [#allocation3], 0
    loop: start=0, step=1, limit=5
    $region2: #{tpu_custom_call.1} parent=1 // loop_pre_header
      _
    $region3: #{tpu_custom_call.1} parent=1 // loop_header
      %s9 = sphi 0, %s13
      %p10 = scmp.ge.s32.totalorder %s9, 5
      %s19 = sphi 0, %s21
      %s22 = sphi 0, %s19
      %s23 = sphi 0, %s22
      %s39 = sphi 0, %s23
      %s45 = sphi 0, %s47
      %s48 = sphi 0, %s45
      %s49 = sphi 0, %s48
      %s65 = sphi 0, %s49
      %s69 = sphi 0, %s69
      %s71 = sphi 0, %s69
      %s72 = sphi 0, %s71
      %s86 = sphi 0, %s72
    $region4: #{tpu_custom_call.1} parent=1 // loop_header_branch
      %12 = sbr.rel (%p10) target = $region8
    $region5: #{tpu_custom_call.1} parent=1 // loop_body
      %s14 = ssub.s32 %s9, 1
      %s15 = ssub.s32 %s9, 2
      %s16 = sadd.s32 %s9, 1
      %s17 = ssub.s32 %s9, %s16
      %p18 = scmp.eq.s32.totalorder %s17, 0
      %s20 = sadd.s32 %s19, 1
      %s21 = scalar_select %p18, %s19, %s20
      %p24 = pneg %p18
      %p25 = scmp.eq.s32.totalorder %s9, 2
      %p26 = por %p24, %p25
      %p27 = scmp.ne.s32.totalorder %s19, %s22
      %p28 = scmp.eq.s32.totalorder %s9, 0
      %p29 = por %p27, %p28
      %p30 = scmp.ne.s32.totalorder %s19, %s22
      %p31 = scmp.eq.s32.totalorder %s14, 2
      %p32 = por %p30, %p31
      %p33 = scmp.ne.s32.totalorder %s22, %s23
      %p34 = scmp.eq.s32.totalorder %s14, 0
      %p35 = por %p33, %p34
      %p36 = scmp.ne.s32.totalorder %s22, %s23
      %p37 = scmp.eq.s32.totalorder %s15, 2
      %p38 = por %p36, %p37
      %p40 = scmp.ne.s32.totalorder %s23, %s39
      %p41 = scmp.eq.s32.totalorder %s15, 0
      %p42 = por %p40, %p41
      %s43 = ssub.s32 %s9, %s16
      %p44 = scmp.eq.s32.totalorder %s43, 0
      %s46 = sadd.s32 %s45, 1
      %s47 = scalar_select %p44, %s45, %s46
      %p50 = pneg %p44
      %p51 = scmp.eq.s32.totalorder %s9, 2
      %p52 = por %p50, %p51
      %p53 = scmp.ne.s32.totalorder %s45, %s48
      %p54 = scmp.eq.s32.totalorder %s9, 0
      %p55 = por %p53, %p54
      %p56 = scmp.ne.s32.totalorder %s45, %s48
      %p57 = scmp.eq.s32.totalorder %s14, 2
      %p58 = por %p56, %p57
      %p59 = scmp.ne.s32.totalorder %s48, %s49
      %p60 = scmp.eq.s32.totalorder %s14, 0
      %p61 = por %p59, %p60
      %p62 = scmp.ne.s32.totalorder %s48, %s49
      %p63 = scmp.eq.s32.totalorder %s15, 2
      %p64 = por %p62, %p63
      %p66 = scmp.ne.s32.totalorder %s49, %s65
      %p67 = scmp.eq.s32.totalorder %s15, 0
      %p68 = por %p66, %p67
      %s70 = sadd.s32 %s69, 1
      %p73 = scmp.eq.s32.totalorder %s9, 2
      %p74 = scmp.ne.s32.totalorder %s69, %s71
      %p75 = scmp.eq.s32.totalorder %s9, 0
      %p76 = por %p74, %p75
      %p77 = scmp.ne.s32.totalorder %s69, %s71
      %p78 = scmp.eq.s32.totalorder %s14, 2
      %p79 = por %p77, %p78
      %p80 = scmp.ne.s32.totalorder %s71, %s72
      %p81 = scmp.eq.s32.totalorder %s14, 0
      %p82 = por %p80, %p81
      %p83 = scmp.ne.s32.totalorder %s71, %s72
      %p84 = scmp.eq.s32.totalorder %s15, 2
      %p85 = por %p83, %p84
      %p87 = scmp.ne.s32.totalorder %s72, %s86
      %p88 = scmp.eq.s32.totalorder %s15, 0
      %p89 = por %p87, %p88
      %p90 = scmp.le.s32.totalorder 1, %s9
      %p91 = scmp.lt.s32.totalorder %s9, 4
      %p92 = pnand %p90, %p91
      %p93 = pneg %p92
      // Predicated region
      $region9: #{tpu_custom_call.1} parent=5 // pred_check
        _
      $region10: #{tpu_custom_call.1} parent=5 // pred_check_branch
        %95 = sbr.rel (%p92) target = $region12
      $region11: #{tpu_custom_call.1} parent=5 // pred_region
        %s96 = ssub.s32 %s9, 1
      $region12: #{tpu_custom_call.1} parent=5 // pred_fallthru
        _
      %p97 = scmp.lt.s32.totalorder %s9, 3
      // Predicated region
      $region13: #{tpu_custom_call.1} parent=5 // pred_check
        %p98 = pneg %p97
      $region14: #{tpu_custom_call.1} parent=5 // pred_check_branch
        %100 = sbr.rel (%p98) target = $region16
      $region15: #{tpu_custom_call.1} parent=5 // pred_region
        // Predicated region
        $region17: #{tpu_custom_call.1} parent=15 // pred_check
          %p101 = pneg %p29
        $region18: #{tpu_custom_call.1} parent=15 // pred_check_branch
          %103 = sbr.rel (%p101) target = $region20
        $region19: #{tpu_custom_call.1} parent=15 // pred_region
          %s104 = smul.u32 2, %s9
          %s105 = ssub.s32 5, %s104
          %p106 = scmp.lt.s32.totalorder %s105, 2
          %s107 = scalar_select %p106, %s105, 2
          %s108 = smul.u32 128, %s107
          %p109 = scmp.lt.s32.totalorder %s104, 4
          %s110 = scalar_select %p109, %s104, 4
          %s111 = smul.addr %s110, 8
          %s112 = scalar_lea.vmem %s0, %s111
          %s113 = smul.u32 2, %s9
          %s114 = ssub.s32 5, %s113
          %p115 = scmp.lt.s32.totalorder %s114, 2
          %s116 = scalar_select %p115, %s114, 2
          %s117 = smul.u32 128, %s116
        $region20: #{tpu_custom_call.1} parent=15 // pred_fallthru
          _
        // Predicated region
        $region21: #{tpu_custom_call.1} parent=15 // pred_check
          %p118 = pneg %p55
        $region22: #{tpu_custom_call.1} parent=15 // pred_check_branch
          %120 = sbr.rel (%p118) target = $region24
        $region23: #{tpu_custom_call.1} parent=15 // pred_region
          %s121 = smul.u32 2, %s9
          %s122 = ssub.s32 5, %s121
          %p123 = scmp.lt.s32.totalorder %s122, 2
          %s124 = scalar_select %p123, %s122, 2
          %s125 = smul.u32 128, %s124
          %p126 = scmp.lt.s32.totalorder %s121, 4
          %s127 = scalar_select %p126, %s121, 4
          %s128 = smul.addr %s127, 8
          %s129 = scalar_lea.vmem %s1, %s128
          %s130 = smul.u32 2, %s9
          %s131 = ssub.s32 5, %s130
          %p132 = scmp.lt.s32.totalorder %s131, 2
          %s133 = scalar_select %p132, %s131, 2
          %s134 = smul.u32 128, %s133
        $region24: #{tpu_custom_call.1} parent=15 // pred_fallthru
          _
      $region16: #{tpu_custom_call.1} parent=5 // pred_fallthru
        _
      %p135 = scmp.le.s32.totalorder 1, %s9
      %p136 = scmp.lt.s32.totalorder %s9, 4
      %p137 = pnand %p135, %p136
      %p138 = pneg %p137
      // Predicated region
      $region25: #{tpu_custom_call.1} parent=5 // pred_check
        _
      $region26: #{tpu_custom_call.1} parent=5 // pred_check_branch
        %140 = sbr.rel (%p137) target = $region28
      $region27: #{tpu_custom_call.1} parent=5 // pred_region
        %s141 = ssub.s32 %s9, 1
        %s142 = smul.u32 2, %s14
        %s143 = ssub.s32 5, %s142
        %p144 = scmp.lt.s32.totalorder %s143, 2
        %s145 = scalar_select %p144, %s143, 2
        %s146 = smul.u32 128, %s145
        %p147 = scmp.lt.s32.totalorder %s142, 4
        %s148 = scalar_select %p147, %s142, 4
        %s149 = smul.addr %s148, 8
        %s150 = scalar_lea.vmem %s0, %s149
        %p151 = pneg %p35
        %p152 = pneg %p32
        %s153 = smul.u32 2, %s14
        %s154 = ssub.s32 5, %s153
        %p155 = scmp.lt.s32.totalorder %s154, 2
        %s156 = scalar_select %p155, %s154, 2
        %s157 = smul.u32 128, %s156
        %p158 = scmp.lt.s32.totalorder %s153, 4
        %s159 = scalar_select %p158, %s153, 4
        %s160 = smul.addr %s159, 8
        %s161 = scalar_lea.vmem %s1, %s160
        %p162 = pneg %p61
        %p163 = pneg %p58
        %p164 = pneg %p82
        %p165 = pneg %p79
        %s166 = smul.u32 2, %s14
        %s167 = ssub.s32 5, %s166
        %p168 = scmp.lt.s32.totalorder %s167, 2
        %s169 = scalar_select %p168, %s167, 2
        %s170 = smul.u32 128, %s169
        %p171 = scmp.lt.s32.totalorder %s166, 4
        %s172 = scalar_select %p171, %s166, 4
        %s173 = smul.addr %s172, 8
        %s174 = scalar_lea.vmem %s0, %s173
        %s175 = smul.u32 2, %s14
        %s176 = ssub.s32 5, %s175
        %p177 = scmp.lt.s32.totalorder %s176, 2
        %s178 = scalar_select %p177, %s176, 2
        %s179 = smul.u32 128, %s178
        %s180 = smul.u32 2, %s14
        %s181 = ssub.s32 5, %s180
        %p182 = scmp.lt.s32.totalorder %s181, 2
        %s183 = scalar_select %p182, %s181, 2
        %s184 = smul.u32 128, %s183
        %p185 = scmp.lt.s32.totalorder %s180, 4
        %s186 = scalar_select %p185, %s180, 4
        %s187 = smul.addr %s186, 8
        %s188 = scalar_lea.vmem %s1, %s187
        %s189 = smul.u32 2, %s14
        %s190 = ssub.s32 5, %s189
        %p191 = scmp.lt.s32.totalorder %s190, 2
        %s192 = scalar_select %p191, %s190, 2
        %s193 = smul.u32 128, %s192
        %p194 = scmp.eq.s32.totalorder %s14, 0
        // Predicated region
        $region29: #{tpu_custom_call.1} parent=27 // pred_check
          %p195 = pneg %p194
        $region30: #{tpu_custom_call.1} parent=27 // pred_check_branch
          %197 = sbr.rel (%p195) target = $region32
        $region31: #{tpu_custom_call.1} parent=27 // pred_region
          %vm198 = vcmask 0
          %199 = vst.msk [vmem:[#allocation2] sm:$0x1] %vm198, 0.0
        $region32: #{tpu_custom_call.1} parent=27 // pred_fallthru
          _
        %v200 = vld [vmem:[%s174] sm:$0xff]
        %v201 = vld [vmem:[%s174 + $0x8] sm:$0xff]
        %v202 = vld [vmem:[%s188] sm:$0xff]
        %v203 = vld [vmem:[%s188 + $0x8] sm:$0xff]
        %vm204 = vcmp.ge.f32.partialorder %v202, 0.0
        %vm205 = vcmp.ge.f32.partialorder %v203, 0.0
        %vm206 = vcmp.lt.f32.partialorder %v202, 0.1
        %vm207 = vcmp.lt.f32.partialorder %v203, 0.1
        %vm208 = vmand %vm204, %vm206
        %vm209 = vmand %vm205, %vm207
        %v210 = vsel %vm208, 1.0, 0.0
        %v211 = vsel %vm209, 1.0, 0.0
        %vm212 = vcmp.ge.f32.partialorder %v202, 0.1
        %vm213 = vcmp.ge.f32.partialorder %v203, 0.1
        %vm214 = vcmp.lt.f32.partialorder %v202, 0.2
        %vm215 = vcmp.lt.f32.partialorder %v203, 0.2
        %vm216 = vmand %vm212, %vm214
        %vm217 = vmand %vm213, %vm215
        %v218 = vsel %vm216, 2.0, %v210
        %v219 = vsel %vm217, 2.0, %v211
        %vm220 = vcmp.ge.f32.partialorder %v202, 0.2
        %vm221 = vcmp.ge.f32.partialorder %v203, 0.2
        %vm222 = vcmp.lt.f32.partialorder %v202, 0.3
        %vm223 = vcmp.lt.f32.partialorder %v203, 0.3
        %vm224 = vmand %vm220, %vm222
        %vm225 = vmand %vm221, %vm223
        %v226 = vsel %vm224, 3.0, %v218
        %v227 = vsel %vm225, 3.0, %v219
        %vm228 = vcmp.ge.f32.partialorder %v202, 0.3
        %vm229 = vcmp.ge.f32.partialorder %v203, 0.3
        %vm230 = vcmp.lt.f32.partialorder %v202, 0.4
        %vm231 = vcmp.lt.f32.partialorder %v203, 0.4
        %vm232 = vmand %vm228, %vm230
        %vm233 = vmand %vm229, %vm231
        %v234 = vsel %vm232, 4.0, %v226
        %v235 = vsel %vm233, 4.0, %v227
        %vm236 = vcmp.ge.f32.partialorder %v202, 0.4
        %vm237 = vcmp.ge.f32.partialorder %v203, 0.4
        %vm238 = vcmp.lt.f32.partialorder %v202, 0.5
        %vm239 = vcmp.lt.f32.partialorder %v203, 0.5
        %vm240 = vmand %vm236, %vm238
        %vm241 = vmand %vm237, %vm239
        %v242 = vsel %vm240, 5.0, %v234
        %v243 = vsel %vm241, 5.0, %v235
        %vm244 = vcmp.ge.f32.partialorder %v202, 0.5
        %vm245 = vcmp.ge.f32.partialorder %v203, 0.5
        %vm246 = vcmp.lt.f32.partialorder %v202, 0.6
        %vm247 = vcmp.lt.f32.partialorder %v203, 0.6
        %vm248 = vmand %vm244, %vm246
        %vm249 = vmand %vm245, %vm247
        %v250 = vsel %vm248, 6.0, %v242
        %v251 = vsel %vm249, 6.0, %v243
        %vm252 = vcmp.ge.f32.partialorder %v202, 0.6
        %vm253 = vcmp.ge.f32.partialorder %v203, 0.6
        %vm254 = vcmp.lt.f32.partialorder %v202, 0.7
        %vm255 = vcmp.lt.f32.partialorder %v203, 0.7
        %vm256 = vmand %vm252, %vm254
        %vm257 = vmand %vm253, %vm255
        %v258 = vsel %vm256, 7.0, %v250
        %v259 = vsel %vm257, 7.0, %v251
        %vm260 = vcmp.ge.f32.partialorder %v202, 0.7
        %vm261 = vcmp.ge.f32.partialorder %v203, 0.7
        %vm262 = vcmp.lt.f32.partialorder %v202, 0.8
        %vm263 = vcmp.lt.f32.partialorder %v203, 0.8
        %vm264 = vmand %vm260, %vm262
        %vm265 = vmand %vm261, %vm263
        %v266 = vsel %vm264, 8.0, %v258
        %v267 = vsel %vm265, 8.0, %v259
        %vm268 = vcmp.ge.f32.partialorder %v202, 0.8
        %vm269 = vcmp.ge.f32.partialorder %v203, 0.8
        %vm270 = vcmp.lt.f32.partialorder %v202, 0.9
        %vm271 = vcmp.lt.f32.partialorder %v203, 0.9
        %vm272 = vmand %vm268, %vm270
        %vm273 = vmand %vm269, %vm271
        %v274 = vsel %vm272, 9.0, %v266
        %v275 = vsel %vm273, 9.0, %v267
        %vm276 = vcmp.ge.f32.partialorder %v202, 0.9
        %vm277 = vcmp.ge.f32.partialorder %v203, 0.9
        %vm278 = vcmp.lt.f32.partialorder %v202, 1.0
        %vm279 = vcmp.lt.f32.partialorder %v203, 1.0
        %vm280 = vmand %vm276, %vm278
        %vm281 = vmand %vm277, %vm279
        %v282 = vsel %vm280, 10.0, %v274
        %v283 = vsel %vm281, 10.0, %v275
        %v284 = vsub.f32 %v200, %v202
        %v285 = vsub.f32 %v201, %v203
        %v286 = vmul.f32 %v284, %v284
        %v287 = vmul.f32 %v285, %v285
        %289 = vset.pattern.permute.xlu0 0
        %290 = vperm.xlu0 %289, %v282
        %v291 = vpop.permute.xlu0 %290
        %294 = vset.pattern.permute.xlu0 0
        %295 = vperm.xlu0 %294, %v283
        %v296 = vpop.permute.xlu0 %295
        %v298 = vmul.f32 %v286, %v291
        %v299 = vmul.f32 %v287, %v296
        %v300 = vlaneseq
        %v301 = vshrl.u32 %v300, 7
        %v302 = vadd.s32 %v301, 8
        %s303 = smul.u32 %s14, 16
        %v304 = vstv %s303
        %v305 = vadd.s32 %v301, %v304
        %v306 = vadd.s32 %v302, %v304
        %vm307 = vcmp.lt.s32.totalorder %v305, 40
        %vm308 = vcmp.lt.s32.totalorder %v306, 40
        %v309 = vsel %vm307, 1, 0
        %v310 = vsel %vm308, 1, 0
        %vm311 = vcmp.eq.s32.totalorder %v309, 1
        %vm312 = vcmp.eq.s32.totalorder %v310, 1
        %v313 = vsel %vm311, %v298, 0.0
        %v314 = vsel %vm312, %v299, 0.0
        %v315 = vld [vmem:[#allocation2] sm:$0x1]
        %vm316 = vcmask 64512
        %v317 = vsel %vm316, %v313, 0.0
        %v318 = vsel %vm316, %v314, 0.0
        %v319 = vadd.f32 %v317, %v318
        %320 = vadd.xlane.f32.xlu0 %v319
        %v321 = vpop.xlane.xlu0 %320
        %v322 = vrot.slane %v321, 4
        %v323 = vadd.f32 %v321, %v322
        %v324 = vrot.slane %v323, 2
        %v325 = vadd.f32 %v323, %v324
        %v326 = vrot.slane %v325, 1
        %v327 = vadd.f32 %v325, %v326
        %s328 = vtos %v327
        %v329 = vstv %s328
        %v330 = vadd.f32 %v315, %v329
        %vm331 = vcmask 0
        %332 = vst.msk [vmem:[#allocation2] sm:$0x1] %vm331, %v330
        %p333 = scmp.eq.s32.totalorder %s14, 2
        // Predicated region
        $region33: #{tpu_custom_call.1} parent=27 // pred_check
          %p334 = pneg %p333
        $region34: #{tpu_custom_call.1} parent=27 // pred_check_branch
          %336 = sbr.rel (%p334) target = $region36
        $region35: #{tpu_custom_call.1} parent=27 // pred_region
          %v337 = vld [vmem:[#allocation2] sm:$0x1]
          %v338 = vmul.f32 %v337, 0.003125
          %339 = vst.msk [vmem:[#allocation2] sm:$0x1] %vm331, %v338
        $region36: #{tpu_custom_call.1} parent=27 // pred_fallthru
          _
        // Predicated region
        $region37: #{tpu_custom_call.1} parent=27 // pred_check
          %p340 = pneg %p79
        $region38: #{tpu_custom_call.1} parent=27 // pred_check_branch
          %342 = sbr.rel (%p340) target = $region40
        $region39: #{tpu_custom_call.1} parent=27 // pred_region
          %s344 = ssub.s32 16, 16
          %345 = vsyncadd [#allocation3], %s344
          %s347 = sshll.u32 [#allocation2], 4
          %s348 = int_to_ptr.vmem [resolvable:$true] %s347
          %350 = dma.vmem_to_hbm [thread:$0]  %s348, 16, %s2, [#allocation3]
        $region40: #{tpu_custom_call.1} parent=27 // pred_fallthru
          _
        // Predicated region
        $region41: #{tpu_custom_call.1} parent=27 // pred_check
          %p351 = pneg %p79
        $region42: #{tpu_custom_call.1} parent=27 // pred_check_branch
          %353 = sbr.rel (%p351) target = $region44
        $region43: #{tpu_custom_call.1} parent=27 // pred_region
          %354 = dma.done [#allocation3], 16
        $region44: #{tpu_custom_call.1} parent=27 // pred_fallthru
          _
      $region28: #{tpu_custom_call.1} parent=5 // pred_fallthru
        _
      %p355 = scmp.le.s32.totalorder 2, %s9
      // Predicated region
      $region45: #{tpu_custom_call.1} parent=5 // pred_check
        %p356 = pneg %p355
      $region46: #{tpu_custom_call.1} parent=5 // pred_check_branch
        %358 = sbr.rel (%p356) target = $region48
      $region47: #{tpu_custom_call.1} parent=5 // pred_region
        %s359 = ssub.s32 %s9, 2
      $region48: #{tpu_custom_call.1} parent=5 // pred_fallthru
        _
    $region6: #{tpu_custom_call.1} parent=1 // loop_footer
      %s13 = sadd.s32 1, %s9
    $region7: #{tpu_custom_call.1} parent=1 // loop_footer_branch
      %8 = sbr.rel target = $region3
    $region8: #{tpu_custom_call.1} parent=1 // loop_exit
      _
    %360 = vsyncpa [#allocation3], 1
    %s361 = scalar_lea.sflag [#allocation3], 1
    %362 = vsyncpa %s361, 1

</llo_original>
